<compile_context>
chip_gen: v6e
topology: v6e:2x2x1
jax: 0.10.0
libtpu: 0.0.40
codegen_flags: <defaults>
</compile_context>

<pallas_src>
import jax
import jax.numpy as jnp
from jax import lax
from jax.experimental import pallas as pl
from jax.experimental.pallas import tpu as pltpu
import numpy as np


def dilated_block_kernel(slab_ref, w_ref, b_ref, out_ref):
    # slab_ref: (3C, LT)  sublane-stacked shifted inputs [x[t-d]; x[t]; x[t+d]]
    # w_ref:    (C, 3C)   fused weights  [w2@w1_k0 | w2@w1_k1 | w2@w1_k2]
    # b_ref:    (C, 1)    fused bias     w2 @ b1 + b2   (always f32)
    # out_ref:  (C, LT)
    C = w_ref.shape[0]

    # single MXU push, f32 accumulation regardless of operand dtype
    z = jnp.dot(w_ref[...], slab_ref[...], preferred_element_type=jnp.float32)

    # residual == center-tap rows of the slab (rows C:2C are exactly x);
    # static, sublane-aligned slice.
    resid = slab_ref[C:2 * C, :].astype(jnp.float32)

    out_ref[...] = (z + b_ref[...] + resid).astype(out_ref.dtype)


def dilated_block(x, w1, b1, w2, b2, dilation, *,
                  compute_dtype=jnp.float32, num_lane_tiles=1):
    """x: (N, C, T). w1: (C, C, 3), b1: (C,), w2: (C, C), b2: (C,).

    compute_dtype:  jnp.float32 (default) or jnp.bfloat16 for MXU operands
                    (accumulation / bias stay f32).
    num_lane_tiles: 1 (default, best on single-TC v5e/v6e) or 2 on v7x so both
                    TensorCores get a lane-dense chunk of the N*T axis.
    """
    N, C, T = x.shape
    d = int(dilation)

    # ---- plain-JAX glue (hoisted out of the kernel) -------------------------
    # zero-pad the time axis; guard the residual-recovery invariant.
    x_pad = jnp.pad(x, ((0, 0), (0, 0), (d, d)))
    assert x_pad.shape[-1] - T == 2 * d, "padding must be symmetric (= dilation)"

    # time-shifted views: y[t] uses x[t-d], x[t], x[t+d] (zeros outside range)
    x_m = x_pad[:, :, 0:T]                 # x[t - d]
    x_p = x_pad[:, :, 2 * d:2 * d + T]     # x[t + d]

    # stack taps along channels (sublanes), fold batch onto the lane axis:
    # (N, 3C, T) -> (3C, N, T) -> (3C, N*T)
    slab = jnp.concatenate([x_m, x, x_p], axis=1)
    slab = jnp.transpose(slab, (1, 0, 2)).reshape(3 * C, N * T)

    # fuse the 1x1 conv into the dilated taps (done once, in plain JAX):
    #   z = w2 @ (sum_k w1_k @ x_shift_k + b1) + b2 + x
    #     = sum_k (w2 @ w1_k) @ x_shift_k + (w2 @ b1 + b2) + x
    w1_k = jnp.transpose(w1, (2, 0, 1))                        # (3, C, C), tap-major
    w_fused = jnp.einsum('oc,kci->koi', w2, w1_k)              # (3, C, C) = w2 @ w1_k
    w_stack = jnp.concatenate(
        [w_fused[0], w_fused[1], w_fused[2]], axis=1)          # (C, 3C)
    b_fused = (w2 @ b1 + b2).reshape(C, 1).astype(jnp.float32)  # (C, 1), f32 always

    slab = slab.astype(compute_dtype)
    w_stack = w_stack.astype(compute_dtype)

    # ---- lane tiling ---------------------------------------------------------
    NT = N * T
    nt = int(num_lane_tiles)
    if nt < 1 or NT % nt != 0 or (nt > 1 and (NT // nt) % 128 != 0):
        nt = 1                       # fall back to a single lane-dense step
    LT = NT // nt

    out = pl.pallas_call(
        dilated_block_kernel,
        out_shape=jax.ShapeDtypeStruct((C, NT), x.dtype),
        grid_spec=pltpu.PrefetchScalarGridSpec(
            num_scalar_prefetch=0,
            grid=(nt,),
            in_specs=[
                pl.BlockSpec((3 * C, LT), lambda i: (0, i)),   # stacked slab
                pl.BlockSpec((C, 3 * C), lambda i: (0, 0)),    # fused weights
                pl.BlockSpec((C, 1), lambda i: (0, 0)),        # fused bias (f32)
            ],
            out_specs=pl.BlockSpec((C, LT), lambda i: (0, i)),
        ),
        compiler_params=pltpu.CompilerParams(
            dimension_semantics=("parallel",)),
    )(slab, w_stack, b_fused)

    # (C, N*T) -> (N, C, T)
    return out.reshape(C, N, T).transpose(1, 0, 2)


def reference(x, w1, b1, w2, b2, dilation):
    # pure-JAX reference matching PyTorch Conv1d semantics (NCW / OIW)
    d = int(dilation)
    y = lax.conv_general_dilated(
        x, w1, window_strides=(1,), padding=[(d, d)],
        rhs_dilation=(d,),
        dimension_numbers=("NCH", "OIH", "NCH"))
    y = y + b1[None, :, None]
    z = lax.conv_general_dilated(
        y, w2[:, :, None], window_strides=(1,), padding=[(0, 0)],
        dimension_numbers=("NCH", "OIH", "NCH"))
    z = z + b2[None, :, None]
    return z + x


if __name__ == "__main__":
    N, C, T = 2, 8, 128
    dilation = 2

    key = jax.random.PRNGKey(0)
    kx, kw1, kb1, kw2, kb2 = jax.random.split(key, 5)

    x = jax.random.normal(kx, (N, C, T), dtype=jnp.float32)

    # deterministic param init mimicking PyTorch Conv1d default (uniform +-1/sqrt(fan_in))
    bound1 = 1.0 / np.sqrt(C * 3)
    w1 = jax.random.uniform(kw1, (C, C, 3), jnp.float32, -bound1, bound1)
    b1 = jax.random.uniform(kb1, (C,), jnp.float32, -bound1, bound1)
    bound2 = 1.0 / np.sqrt(C * 1)
    w2 = jax.random.uniform(kw2, (C, C), jnp.float32, -bound2, bound2)
    b2 = jax.random.uniform(kb2, (C,), jnp.float32, -bound2, bound2)

    ref = jax.block_until_ready(reference(x, w1, b1, w2, b2, dilation))

    # default path: f32 operands, single lane-dense grid step (v5e/v6e sweet spot)
    out = jax.block_until_ready(dilated_block(x, w1, b1, w2, b2, dilation))
    np.testing.assert_allclose(np.asarray(out), np.asarray(ref), rtol=1e-5, atol=1e-5)

    # v7x-style path: 2-wide parallel lane split (one 128-lane chunk per TC)
    out2 = jax.block_until_ready(
        dilated_block(x, w1, b1, w2, b2, dilation, num_lane_tiles=2))
    np.testing.assert_allclose(np.asarray(out2), np.asarray(ref), rtol=1e-5, atol=1e-5)

    # bf16-operand path (f32 accumulation); looser tolerance per bf16 rounding
    out3 = jax.block_until_ready(
        dilated_block(x, w1, b1, w2, b2, dilation, compute_dtype=jnp.bfloat16))
    np.testing.assert_allclose(np.asarray(out3), np.asarray(ref), rtol=2e-2, atol=2e-2)

    print("KERNEL_OK")
</pallas_src>

<mosaic_0001>
module attributes {stable_mosaic.version = 11 : i64} {
  func.func @dilated_block_kernel(%arg0: i32, %arg1: memref<24x256xf32, #tpu.memory_space<vmem>>, %arg2: memref<8x24xf32, #tpu.memory_space<vmem>>, %arg3: memref<8x1xf32, #tpu.memory_space<vmem>>, %arg4: memref<8x256xf32, #tpu.memory_space<vmem>>) attributes {dimension_semantics = [#tpu.dimension_semantics<parallel>], iteration_bounds = array<i64: 1>, scalar_prefetch = 0 : i64, scratch_operands = 0 : i64, tpu.core_type = #tpu.core_type<tc>, window_params = [{transform_indices = @transform_0, window_bounds = array<i64: 24, 256>}, {pipeline_mode = #tpu.pipeline_mode<synchronous>, transform_indices = @transform_1, window_bounds = array<i64: 8, 24>}, {pipeline_mode = #tpu.pipeline_mode<synchronous>, transform_indices = @transform_2, window_bounds = array<i64: 8, 1>}, {transform_indices = @transform_3, window_bounds = array<i64: 8, 256>}]} {
    %c0 = arith.constant 0 : index
    %c0_0 = arith.constant 0 : index
    %0 = vector.load %arg2[%c0, %c0_0] : memref<8x24xf32, #tpu.memory_space<vmem>>, vector<8x24xf32>
    %c0_1 = arith.constant 0 : index
    %c0_2 = arith.constant 0 : index
    %1 = vector.load %arg1[%c0_1, %c0_2] : memref<24x256xf32, #tpu.memory_space<vmem>>, vector<24x256xf32>
    %cst = arith.constant dense<0.000000e+00> : vector<8x256xf32>
    %2 = tpu.matmul %0, %1, %cst {dimension_numbers = #tpu.dot_dimension_numbers<[1], [0], [0], [1], [0, 0, 1, 1], [], []>} : vector<8x24xf32>, vector<24x256xf32>, vector<8x256xf32> -> vector<8x256xf32>
    %c8 = arith.constant 8 : index
    %c0_3 = arith.constant 0 : index
    %3 = vector.load %arg1[%c8, %c0_3] : memref<24x256xf32, #tpu.memory_space<vmem>>, vector<8x256xf32>
    %c0_4 = arith.constant 0 : index
    %c0_5 = arith.constant 0 : index
    %4 = vector.load %arg3[%c0_4, %c0_5] : memref<8x1xf32, #tpu.memory_space<vmem>>, vector<8x1xf32>
    %5 = vector.broadcast %4 : vector<8x1xf32> to vector<8x256xf32>
    %6 = arith.addf %2, %5 : vector<8x256xf32>
    %7 = arith.addf %6, %3 : vector<8x256xf32>
    %c0_6 = arith.constant 0 : index
    %c0_7 = arith.constant 0 : index
    %8 = vector.load %arg4[%c0_6, %c0_7] : memref<8x256xf32, #tpu.memory_space<vmem>>, vector<8x256xf32>
    tpu.vector_store %arg4[%c0_6, %c0_7], %7 {strides = array<i32>} : memref<8x256xf32, #tpu.memory_space<vmem>>, vector<8x256xf32>,
    return
  }
  func.func @transform_0(%arg0: i32) -> (i32, i32) {
    %c0_i32 = arith.constant 0 : i32
    %c0_i32_0 = arith.constant 0 : i32
    return %c0_i32, %arg0 : i32, i32
  }
  func.func @transform_1(%arg0: i32) -> (i32, i32) {
    %c0_i32 = arith.constant 0 : i32
    %c0_i32_0 = arith.constant 0 : i32
    %c0_i32_1 = arith.constant 0 : i32
    return %c0_i32, %c0_i32_0 : i32, i32
  }
  func.func @transform_2(%arg0: i32) -> (i32, i32) {
    %c0_i32 = arith.constant 0 : i32
    %c0_i32_0 = arith.constant 0 : i32
    %c0_i32_1 = arith.constant 0 : i32
    return %c0_i32, %c0_i32_0 : i32, i32
  }
  func.func @transform_3(%arg0: i32) -> (i32, i32) {
    %c0_i32 = arith.constant 0 : i32
    %c0_i32_0 = arith.constant 0 : i32
    return %c0_i32, %arg0 : i32, i32
  }
}

</mosaic_0001>

<llo_original>
// kernel: tpu_custom_call.1
$region0: #{tpu_custom_call.1}
  #allocation0 [shape = 'u32[]', space=smem, size = 0x4, offset = 0x4, fixed_abs, tag = 'smem constant byte address 0x4 - core index']
  #allocation1 [shape = 'u32[144,128]{1,0:T(1,128)}', space=vmem, size = 0x12000, scoped, tag = 'internal scratch']
  %s0 = inlined_call_operand.hbm [shape: f32[24,256], index: 0, kind: input, shape index: {}]
  %s1 = inlined_call_operand.vmem [shape: f32[8,24], index: 1, kind: input, shape index: {}]
  %s2 = inlined_call_operand.vmem [shape: f32[8,1], index: 2, kind: input, shape index: {}]
  %s3 = inlined_call_operand.hbm [shape: f32[8,256], index: 3, kind: output, shape index: {}]
  %s4 = sld [smem:[#allocation0]]
  $region26: #{tpu_custom_call.1} parent=0
    _
  %s6 = ssub.s32 1, %s4
  %s7 = scalar_select 0, %s6, %s4
  $region1: #{tpu_custom_call.1} parent=0
    #allocation2 [shape = 'u8[24576]{0}', space=vmem, size = 0x6000, scoped, tag = 'input window, operand 0, single buffered']
    #allocation3 [shape = 's32[1]{0}', space=sflag, size = 0x4, scoped, tag = 'scoped memory for tpu_custom_call.1']
    #allocation4 [shape = 's32[1]{0}', space=sflag, size = 0x4, scoped, tag = 'scoped memory for tpu_custom_call.1']
    #allocation5 [shape = 'u8[8192]{0}', space=vmem, size = 0x2000, scoped, tag = 'output window, operand 0, single buffered']
    %8 = vsyncpa [#allocation3], 0
    %9 = vsyncpa [#allocation4], 0
    // Predicated region
    $region2: #{tpu_custom_call.1} parent=1 // pred_check
      _
    $region3: #{tpu_custom_call.1} parent=1 // pred_check_branch
      %11 = sbr.rel (0) target = $region5
    $region4: #{tpu_custom_call.1} parent=1 // pred_region
      %s13 = ssub.s32 768, 768
      %14 = vsyncadd [#allocation3], %s13
      %s15 = sshll.u32 [#allocation2], 4
      %s16 = int_to_ptr.vmem [resolvable:$true] %s15
      %21 = dma.hbm_to_vmem [thread:$0]  %s0, 768, %s16, [#allocation3], 256, 256, 16
    $region5: #{tpu_custom_call.1} parent=1 // pred_fallthru
      _
    // Predicated region
    $region6: #{tpu_custom_call.1} parent=1 // pred_check
      _
    $region7: #{tpu_custom_call.1} parent=1 // pred_check_branch
      %23 = sbr.rel (0) target = $region9
    $region8: #{tpu_custom_call.1} parent=1 // pred_region
      _
    $region9: #{tpu_custom_call.1} parent=1 // pred_fallthru
      _
    // Predicated region
    $region10: #{tpu_custom_call.1} parent=1 // pred_check
      _
    $region11: #{tpu_custom_call.1} parent=1 // pred_check_branch
      %25 = sbr.rel (0) target = $region13
    $region12: #{tpu_custom_call.1} parent=1 // pred_region
      _
    $region13: #{tpu_custom_call.1} parent=1 // pred_fallthru
      _
    // Predicated region
    $region14: #{tpu_custom_call.1} parent=1 // pred_check
      _
    $region15: #{tpu_custom_call.1} parent=1 // pred_check_branch
      %27 = sbr.rel (0) target = $region17
    $region16: #{tpu_custom_call.1} parent=1 // pred_region
      %28 = dma.done [#allocation3], 768
    $region17: #{tpu_custom_call.1} parent=1 // pred_fallthru
      _
    %v29 = vld [vmem:[%s1] sm:$0xff]
    %v30 = vld [vmem:[#allocation2] sm:$0xff]
    %v31 = vld [vmem:[#allocation2 + $0x8] sm:$0xff]
    %v32 = vld [vmem:[#allocation2 + $0x10] sm:$0xff]
    %v33 = vld [vmem:[#allocation2 + $0x18] sm:$0xff]
    %v34 = vld [vmem:[#allocation2 + $0x20] sm:$0xff]
    %v35 = vld [vmem:[#allocation2 + $0x28] sm:$0xff]
    %v36 = vld [vmem:[#allocation2 + $0x10] sm:$0xff]
    %v37 = vld [vmem:[#allocation2 + $0x18] sm:$0xff]
    %v38 = vld [vmem:[%s2] sm:$0xff]
    %40 = vset.pattern.permute.xlu0 0
    %41 = vperm.xlu0 %40, %v38
    %v42 = vpop.permute.xlu0 %41
    %vm44 = vcmask 195584
    %v46 = vsel %vm44, %v29, 0
    %48 = vmatprep.subr.mxu0 0.0
    %49 = vmatpush1.msra.mxu0 0.0
    %50 = vmatprep.subr.mxu0 0.0
    %51 = vmatpush1.msra.mxu0 0.0
    %52 = vmatprep.subr.mxu0 0.0
    %53 = vmatpush1.msra.mxu0 0.0
    %54 = vmatprep.subr.mxu0 0.0
    %55 = vmatpush1.msra.mxu0 0.0
    %56 = vmatprep.subr.mxu0 0.0
    %57 = vmatpush1.msra.mxu0 0.0
    %58 = vmatprep.subr.mxu0 0.0
    %59 = vmatpush1.msra.mxu0 0.0
    %60 = vmatprep.subr.mxu0 0.0
    %61 = vmatpush1.msra.mxu0 0.0
    %62 = vmatprep.subr.mxu0 0.0
    %63 = vmatpush1.msra.mxu0 0.0
    %64 = vmatprep.subr.mxu0 0.0
    %65 = vmatpush1.msra.mxu0 0.0
    %66 = vmatprep.subr.mxu0 0.0
    %67 = vmatpush1.msra.mxu0 0.0
    %68 = vmatprep.subr.mxu0 0.0
    %69 = vmatpush1.msra.mxu0 0.0
    %70 = vmatprep.subr.mxu0 0.0
    %71 = vmatpush1.msra.mxu0 0.0
    %72 = vmatprep.subr.mxu0 0.0
    %73 = vmatpush1.msra.mxu0 0.0
    %74 = vmatprep.subr.mxu0 %v35
    %75 = vmatpush1.msra.mxu0 %v34
    %76 = vmatprep.subr.mxu0 %v33
    %77 = vmatpush1.msra.mxu0 %v32
    %78 = vmatprep.subr.mxu0 %v31
    %79 = vmatpush1.msra.mxu0 %v30
    %80 = vmatprep.subr.mxu0 0.0
    %81 = vmatpush2.msra.mxu0 0.0
    %82 = vmatprep.subr.mxu0 0.0
    %83 = vmatpush2.msra.mxu0 0.0
    %84 = vmatprep.subr.mxu0 0.0
    %85 = vmatpush2.msra.mxu0 0.0
    %86 = vmatprep.subr.mxu0 0.0
    %87 = vmatpush2.msra.mxu0 0.0
    %88 = vmatprep.subr.mxu0 0.0
    %89 = vmatpush2.msra.mxu0 0.0
    %90 = vmatprep.subr.mxu0 0.0
    %91 = vmatpush2.msra.mxu0 0.0
    %92 = vmatprep.subr.mxu0 0.0
    %93 = vmatpush2.msra.mxu0 0.0
    %94 = vmatprep.subr.mxu0 0.0
    %95 = vmatpush2.msra.mxu0 0.0
    %96 = vmatprep.subr.mxu0 0.0
    %97 = vmatpush2.msra.mxu0 0.0
    %98 = vmatprep.subr.mxu0 0.0
    %99 = vmatpush2.msra.mxu0 0.0
    %100 = vmatprep.subr.mxu0 0.0
    %101 = vmatpush2.msra.mxu0 0.0
    %102 = vmatprep.subr.mxu0 0.0
    %103 = vmatpush2.msra.mxu0 0.0
    %104 = vmatprep.subr.mxu0 0.0
    %105 = vmatpush2.msra.mxu0 0.0
    %106 = vmatprep.subr.mxu0 0.0
    %107 = vmatpush2.msra.mxu0 0.0
    %108 = vmatprep.subr.mxu0 0.0
    %109 = vmatpush2.msra.mxu0 0.0
    %110 = vmatprep.subr.mxu0 0.0
    %111 = vmatpush2.msra.mxu0 0.0
    %112 = vmatprep.mubr.f32.mxu0 0.0
    %113 = vmatmul.mubr.f32.gmra.mxu0 %v46
    %v114 = vpop.f32.mrf.mxu0
    %v115 = vadd.f32 %v42, %v114
    %v116 = vpop.f32.mrf.mxu0
    %v117 = vadd.f32 %v42, %v116
    %118 = vdwg.mxu0
    %v119 = vadd.f32 %v115, %v36
    %v120 = vadd.f32 %v117, %v37
    %121 = vst [vmem:[#allocation5] sm:$0xff] %v119
    %122 = vst [vmem:[#allocation5 + $0x8] sm:$0xff] %v120
    // Predicated region
    $region18: #{tpu_custom_call.1} parent=1 // pred_check
      _
    $region19: #{tpu_custom_call.1} parent=1 // pred_check_branch
      %124 = sbr.rel (0) target = $region21
    $region20: #{tpu_custom_call.1} parent=1 // pred_region
      %s126 = ssub.s32 256, 256
      %127 = vsyncadd [#allocation4], %s126
      %s129 = sshll.u32 [#allocation5], 4
      %s130 = int_to_ptr.vmem [resolvable:$true] %s129
      %132 = dma.vmem_to_hbm [thread:$0]  %s130, 256, %s3, [#allocation4]
    $region21: #{tpu_custom_call.1} parent=1 // pred_fallthru
      _
    // Predicated region
    $region22: #{tpu_custom_call.1} parent=1 // pred_check
      _
    $region23: #{tpu_custom_call.1} parent=1 // pred_check_branch
      %134 = sbr.rel (0) target = $region25
    $region24: #{tpu_custom_call.1} parent=1 // pred_region
      %135 = dma.done [#allocation4], 256
    $region25: #{tpu_custom_call.1} parent=1 // pred_fallthru
      _
    %136 = vsyncpa [#allocation3], 1
    %137 = vsyncpa [#allocation4], 1

</llo_original>
